<compile_context>
chip_gen: v7x
topology: tpu7x:2x2x1
jax: 0.10.0
libtpu: 0.0.40
codegen_flags: <defaults>
</compile_context>

<pallas_src>
import functools

import jax
import jax.numpy as jnp
from jax.experimental import pallas as pl
from jax.experimental.pallas import tpu as pltpu

_TARGET_BLOCK_BYTES = 4 * 1024 * 1024  # ~4 MiB per input block per buffer


def _qfl_kernel(pred_ref, tgt_ref, out_ref, *, beta, mask_tail, tail_valid_rows):
    q = pl.program_id(1)

    @pl.when(q == 0)
    def _init():
        out_ref[0, 0] = jnp.float32(0.0)

    x = pred_ref[...].astype(jnp.float32)   # logits ("heatmaps_pred")
    y = tgt_ref[...].astype(jnp.float32)    # targets ("heatmaps_gt")

    d = x - y
    abs_x = jnp.abs(x)

    # weight = |1 - x| * y**0.01 + |x| * (1 - y**0.01)
    #        = |x| + y**0.01 * (|1 - x| - |x|)       (one fewer mul, no 1-y_pow)
    # TODO(synk): if bundle dumps show the single EUP slot binding (v5e/v7x),
    # replace y**0.01 (= exp(0.01*log y)) with a VPU rational approx on [0, 1].
    y_pow = jnp.power(y, 0.01)
    weight = abs_x + y_pow * (jnp.abs(1.0 - x) - abs_x)

    # F.binary_cross_entropy_with_logits(pred, gt, reduction='none'),
    # stable form: max(x, 0) - x*y + log1p(exp(-|x|))
    bce = jnp.maximum(x, 0.0) - x * y + jnp.log1p(jnp.exp(-abs_x))

    # |x - y| ** beta: integer beta lowers to plain multiplies; even beta needs
    # no abs at all (d*d == |d|**2).
    beta_f = float(beta)
    if beta_f == int(beta_f) and beta_f >= 0:
        bi = int(beta_f)
        if bi == 0:
            mod = None
        elif bi % 2 == 0:
            sq = d * d
            mod = sq
            for _ in range(bi // 2 - 1):
                mod = mod * sq
        else:
            e = jnp.abs(d)
            mod = e
            for _ in range(bi - 1):
                mod = mod * e
    else:
        mod = jnp.abs(d) ** jnp.float32(beta_f)

    loss = bce * weight
    if mod is not None:
        loss = loss * mod

    if mask_tail:
        # Only the single tail block pays for the row mask (OOB tail rows hold
        # unspecified data; mask after the loss compute so NaN/Inf is dropped).
        is_tail = jnp.logical_and(pl.program_id(0) == pl.num_programs(0) - 1,
                                  q == pl.num_programs(1) - 1)

        @pl.when(is_tail)
        def _acc_tail():
            rows = jax.lax.broadcasted_iota(jnp.int32, loss.shape, 0)
            masked = jnp.where(rows < tail_valid_rows, loss, 0.0)
            out_ref[0, 0] = out_ref[0, 0] + jnp.sum(masked)

        @pl.when(jnp.logical_not(is_tail))
        def _acc_full():
            out_ref[0, 0] = out_ref[0, 0] + jnp.sum(loss)
    else:
        out_ref[0, 0] = out_ref[0, 0] + jnp.sum(loss)


def _vmem_capacity_bytes():
    # Generation-aware budget (v5e/v6e: 128 MiB, v7x: 64 MiB per TensorCore).
    try:
        return int(pltpu.get_tpu_info().vmem_capacity_bytes)
    except Exception:
        return 64 << 20  # conservative (v7x-sized) fallback


def _flatten_lane_dense(x):
    """Reshape to (M, L) with L a multiple of 128 when possible (free reshape)."""
    n = x.size
    for lane in (2048, 1024, 512, 256, 128):
        if n % lane == 0:
            return x.reshape(n // lane, lane)
    # Fallback: (B*J, H*W). Full-extent lane block; Mosaic masks padded lanes
    # in logical-shape reductions.
    return x.reshape(x.shape[0] * x.shape[1], -1)


def qfl_loss(pred, target, target_weight=None, *, beta=2):
    """QFL forward. `target_weight` is accepted but unused (matches the PyTorch
    module, which never applies it)."""
    n_elem = pred.size  # total element count for the mean

    # Flatten to a lane-dense (M, K) slab in native dtype; f32 cast is in-kernel.
    p2 = _flatten_lane_dense(pred)
    t2 = _flatten_lane_dense(target)
    m, k = p2.shape
    itemsize = max(jnp.dtype(p2.dtype).itemsize, jnp.dtype(t2.dtype).itemsize)

    # ---- VMEM budget (generation-aware) ----
    cap = _vmem_capacity_bytes()
    budget = (cap * 3) // 4
    # 2 inputs x 2 pipeline buffers (+ headroom) must fit: ~6 block-equivalents.
    target_block = min(_TARGET_BLOCK_BYTES, max(budget // 6, 1 << 20))

    # ---- tile selection: large blocks to amortize per-grid-step overhead ----
    if m <= 8:
        tm = m  # full-extent sublane block (allowed even if not a multiple of 8)
    else:
        tm = target_block // (k * itemsize)
        tm = max(8, (tm // 8) * 8)
        tm = min(tm, (m // 8) * 8)
    # TODO(synk): if a single 8-row block (8*K*itemsize) ever exceeds the VMEM
    # budget (enormous K in the fallback layout), add a lane-axis grid dim.

    nb = -(-m // tm)                      # number of row blocks
    mask_tail = (m % tm) != 0
    tail_valid_rows = m - (nb - 1) * tm
    # Outer "parallel" axis (megacore sharding when the block count splits evenly).
    npar = 2 if (nb % 2 == 0 and nb >= 2) else 1
    nq = nb // npar

    block_in_bytes = tm * k * itemsize
    needed = 2 * 2 * block_in_bytes          # 2 inputs x double-buffered
    vmem_limit = int(min(max(needed + needed // 2 + (2 << 20), 16 << 20), budget))

    partials = pl.pallas_call(
        functools.partial(_qfl_kernel, beta=beta, mask_tail=mask_tail,
                          tail_valid_rows=tail_valid_rows),
        out_shape=jax.ShapeDtypeStruct((npar, 1), jnp.float32),
        grid_spec=pltpu.PrefetchScalarGridSpec(
            num_scalar_prefetch=0,
            grid=(npar, nq),
            in_specs=[
                pl.BlockSpec((tm, k), lambda p, q: (p * nq + q, 0)),
                pl.BlockSpec((tm, k), lambda p, q: (p * nq + q, 0)),
            ],
            out_specs=pl.BlockSpec((1, 1), lambda p, q: (p, 0),
                                   memory_space=pltpu.SMEM),
        ),
        compiler_params=pltpu.CompilerParams(
            dimension_semantics=("parallel", "arbitrary"),
            vmem_limit_bytes=vmem_limit,
        ),
    )(p2, t2)

    return (jnp.sum(partials) / jnp.float32(n_elem)).astype(jnp.float32)


def _qfl_ref(pred, target, beta=2):
    """Pure-JAX reference matching the PyTorch module."""
    b, j = pred.shape[0], pred.shape[1]
    x = pred.reshape(b, j, -1).astype(jnp.float32)
    y = target.reshape(b, j, -1).astype(jnp.float32)
    err = jnp.abs(x - y)
    y_pow = jnp.power(y, 0.01)
    weight = jnp.abs(1.0 - x) * y_pow + jnp.abs(x) * (1.0 - y_pow)
    bce = jnp.maximum(x, 0.0) - x * y + jnp.log1p(jnp.exp(-jnp.abs(x)))
    return jnp.mean(bce * (err ** beta) * weight)


if __name__ == "__main__":
    key = jax.random.PRNGKey(0)
    k1, k2, k3 = jax.random.split(key, 3)

    # Shapes consistent with the module: (batch, joints, H, W) heatmaps.
    B, J, H, W = 2, 4, 16, 16
    pred = jax.random.normal(k1, (B, J, H, W), dtype=jnp.float32)
    # targets are heatmaps in [0, 1] (gt**0.01 requires non-negative values)
    target = jax.random.uniform(k2, (B, J, H, W), dtype=jnp.float32)
    target_weight = jax.random.uniform(k3, (B, J, 1), dtype=jnp.float32)  # unused

    out = jax.block_until_ready(qfl_loss(pred, target, target_weight, beta=2))
    ref = jax.block_until_ready(_qfl_ref(pred, target, beta=2))
    assert jnp.allclose(out, ref, rtol=1e-5, atol=1e-6), (out, ref)

    # Exercise the tail-row mask path (M not a multiple of the tile after the
    # lane-dense reshape).
    B2, J2 = 3, 5
    p_b = jax.random.normal(k1, (B2, J2, H, W), dtype=jnp.float32)
    t_b = jax.random.uniform(k2, (B2, J2, H, W), dtype=jnp.float32)
    out2 = jax.block_until_ready(qfl_loss(p_b, t_b, None, beta=2))
    ref2 = jax.block_until_ready(_qfl_ref(p_b, t_b, beta=2))
    assert jnp.allclose(out2, ref2, rtol=1e-5, atol=1e-6), (out2, ref2)

    # Exercise the native-dtype (bf16) passthrough path (in-kernel upcast).
    p_bf = p_b.astype(jnp.bfloat16)
    t_bf = t_b.astype(jnp.bfloat16)
    out3 = jax.block_until_ready(qfl_loss(p_bf, t_bf, None, beta=2))
    ref3 = jax.block_until_ready(_qfl_ref(p_bf, t_bf, beta=2))
    assert jnp.allclose(out3, ref3, rtol=1e-3, atol=1e-5), (out3, ref3)

    # Exercise the non-multiple-of-128 lane fallback ((B*J, H*W) layout with a
    # full-extent lane block; padded lanes masked by the logical-shape reduce).
    H3 = W3 = 9
    p_c = jax.random.normal(k1, (B, J, H3, W3), dtype=jnp.float32)
    t_c = jax.random.uniform(k2, (B, J, H3, W3), dtype=jnp.float32)
    out4 = jax.block_until_ready(qfl_loss(p_c, t_c, None, beta=2))
    ref4 = jax.block_until_ready(_qfl_ref(p_c, t_c, beta=2))
    assert jnp.allclose(out4, ref4, rtol=1e-5, atol=1e-6), (out4, ref4)

    print("KERNEL_OK")
</pallas_src>

<mosaic_0001>
module attributes {stable_mosaic.version = 11 : i64} {
  func.func @_qfl_kernel(%arg0: i32, %arg1: i32, %arg2: memref<1x2048xf32, #tpu.memory_space<vmem>>, %arg3: memref<1x2048xf32, #tpu.memory_space<vmem>>, %arg4: memref<1x1xf32, #tpu.memory_space<smem>>) attributes {dimension_semantics = [#tpu.dimension_semantics<parallel>, #tpu.dimension_semantics<arbitrary>], iteration_bounds = array<i64: 1, 1>, scalar_prefetch = 0 : i64, scratch_operands = 0 : i64, tpu.core_type = #tpu.core_type<tc>, window_params = [{transform_indices = @transform_0, window_bounds = array<i64: 1, 2048>}, {transform_indices = @transform_1, window_bounds = array<i64: 1, 2048>}, {transform_indices = @transform_2, window_bounds = array<i64: 1, 1>}]} {
    %c0_i32 = arith.constant 0 : i32
    %0 = arith.cmpi eq, %arg1, %c0_i32 : i32
    %1 = arith.extui %0 : i1 to i32
    %c0_i32_0 = arith.constant 0 : i32
    %2 = arith.cmpi ne, %1, %c0_i32_0 : i32
    scf.if %2 {
      %cst_12 = arith.constant 0.000000e+00 : f32
      %c0_13 = arith.constant 0 : index
      %c0_14 = arith.constant 0 : index
      %34 = memref.load %arg4[%c0_13, %c0_14] : memref<1x1xf32, #tpu.memory_space<smem>>
      memref.store %cst_12, %arg4[%c0_13, %c0_14] : memref<1x1xf32, #tpu.memory_space<smem>>
    } else {
    }
    %c0 = arith.constant 0 : index
    %c0_1 = arith.constant 0 : index
    %3 = vector.load %arg2[%c0, %c0_1] : memref<1x2048xf32, #tpu.memory_space<vmem>>, vector<1x2048xf32>
    %c0_2 = arith.constant 0 : index
    %c0_3 = arith.constant 0 : index
    %4 = vector.load %arg3[%c0_2, %c0_3] : memref<1x2048xf32, #tpu.memory_space<vmem>>, vector<1x2048xf32>
    %5 = arith.subf %3, %4 : vector<1x2048xf32>
    %6 = math.absf %3 : vector<1x2048xf32>
    %cst = arith.constant 0.00999999977 : f32
    %7 = vector.broadcast %cst : f32 to vector<1x2048xf32>
    %8 = math.powf %4, %7 : vector<1x2048xf32>
    %cst_4 = arith.constant 1.000000e+00 : f32
    %9 = vector.broadcast %cst_4 : f32 to vector<1x2048xf32>
    %10 = arith.subf %9, %3 : vector<1x2048xf32>
    %11 = math.absf %10 : vector<1x2048xf32>
    %12 = arith.subf %11, %6 : vector<1x2048xf32>
    %13 = arith.mulf %8, %12 : vector<1x2048xf32>
    %14 = arith.addf %6, %13 : vector<1x2048xf32>
    %cst_5 = arith.constant 0.000000e+00 : f32
    %15 = vector.broadcast %cst_5 : f32 to vector<1x2048xf32>
    %16 = arith.maximumf %3, %15 : vector<1x2048xf32>
    %17 = arith.mulf %3, %4 : vector<1x2048xf32>
    %18 = arith.subf %16, %17 : vector<1x2048xf32>
    %cst_6 = arith.constant 0.000000e+00 : f32
    %19 = vector.broadcast %cst_6 : f32 to vector<1x2048xf32>
    %20 = arith.subf %19, %6 : vector<1x2048xf32>
    %21 = math.exp %20 : vector<1x2048xf32>
    %22 = math.log1p %21 : vector<1x2048xf32>
    %23 = arith.addf %18, %22 : vector<1x2048xf32>
    %24 = arith.mulf %5, %5 : vector<1x2048xf32>
    %25 = arith.mulf %23, %14 : vector<1x2048xf32>
    %26 = arith.mulf %25, %24 : vector<1x2048xf32>
    %c0_7 = arith.constant 0 : index
    %c0_8 = arith.constant 0 : index
    %27 = memref.load %arg4[%c0_7, %c0_8] : memref<1x1xf32, #tpu.memory_space<smem>>
    %28 = vector.shape_cast %26 : vector<1x2048xf32> to vector<1x1x2048xf32>
    %cst_9 = arith.constant dense<0.000000e+00> : vector<1xf32>
    %29 = vector.multi_reduction <add>, %28, %cst_9 [1, 2] : vector<1x1x2048xf32> to vector<1xf32>
    %30 = vector.shape_cast %29 : vector<1xf32> to vector<1x1x1xf32>
    %31 = vector.extract %30[0, 0, 0] : f32 from vector<1x1x1xf32>
    %32 = arith.addf %27, %31 : f32
    %c0_10 = arith.constant 0 : index
    %c0_11 = arith.constant 0 : index
    %33 = memref.load %arg4[%c0_10, %c0_11] : memref<1x1xf32, #tpu.memory_space<smem>>
    memref.store %32, %arg4[%c0_10, %c0_11] : memref<1x1xf32, #tpu.memory_space<smem>>
    return
  }
  func.func @transform_0(%arg0: i32, %arg1: i32) -> (i32, i32) {
    %c1_i32 = arith.constant 1 : i32
    %0 = arith.muli %arg0, %c1_i32 : i32
    %1 = arith.addi %0, %arg1 : i32
    %c0_i32 = arith.constant 0 : i32
    %c0_i32_0 = arith.constant 0 : i32
    return %1, %c0_i32 : i32, i32
  }
  func.func @transform_1(%arg0: i32, %arg1: i32) -> (i32, i32) {
    %c1_i32 = arith.constant 1 : i32
    %0 = arith.muli %arg0, %c1_i32 : i32
    %1 = arith.addi %0, %arg1 : i32
    %c0_i32 = arith.constant 0 : i32
    %c0_i32_0 = arith.constant 0 : i32
    return %1, %c0_i32 : i32, i32
  }
  func.func @transform_2(%arg0: i32, %arg1: i32) -> (i32, i32) {
    %c0_i32 = arith.constant 0 : i32
    %c0_i32_0 = arith.constant 0 : i32
    return %arg0, %c0_i32 : i32, i32
  }
}

</mosaic_0001>

<llo_original>
// kernel: tpu_custom_call.1
$region0: #{tpu_custom_call.1}
  #allocation0 [shape = 'u32[]', space=smem, size = 0x4, offset = 0x4, fixed_abs, tag = 'smem constant byte address 0x4 - core index']
  #allocation1 [shape = 'u32[144,128]{1,0:T(1,128)}', space=vmem, size = 0x12000, scoped, tag = 'internal scratch']
  %s0 = inlined_call_operand.hbm [shape: f32[1,2048], index: 0, kind: input, shape index: {}]
  %s1 = inlined_call_operand.hbm [shape: f32[1,2048], index: 1, kind: input, shape index: {}]
  %s2 = inlined_call_operand.hbm [shape: f32[1,1], index: 2, kind: output, shape index: {}]
  %s3 = sld [smem:[#allocation0]]
  $region30: #{tpu_custom_call.1} parent=0
    _
  %s5 = ssub.s32 1, %s3
  %s6 = scalar_select 0, %s5, %s3
  $region1: #{tpu_custom_call.1} parent=0
    #allocation2 [shape = 'u8[8192]{0}', space=vmem, size = 0x2000, scoped, tag = 'input window, operand 0, single buffered']
    #allocation3 [shape = 's32[1]{0}', space=sflag, size = 0x4, scoped, tag = 'scoped memory for tpu_custom_call.1']
    #allocation4 [shape = 's32[1]{0}', space=sflag, size = 0x4, scoped, tag = 'scoped memory for tpu_custom_call.1']
    #allocation5 [shape = 'u8[8192]{0}', space=vmem, size = 0x2000, scoped, tag = 'input window, operand 1, single buffered']
    #allocation6 [shape = 's32[1]{0}', space=sflag, size = 0x4, scoped, tag = 'scoped memory for tpu_custom_call.1']
    #allocation7 [shape = 'u8[512]{0}', space=smem, size = 0x200, scoped, tag = 'output window, operand 0, single buffered']
    %7 = vsyncpa [#allocation3], 0
    %8 = vsyncpa [#allocation6], 0
    %9 = vsyncpa [#allocation4], 0
    // Predicated region
    $region2: #{tpu_custom_call.1} parent=1 // pred_check
      _
    $region3: #{tpu_custom_call.1} parent=1 // pred_check_branch
      %11 = sbr.rel (0) target = $region5
    $region4: #{tpu_custom_call.1} parent=1 // pred_region
      %s12 = sadd.s32 0, 0
      %s14 = ssub.s32 256, 256
      %15 = vsyncadd [#allocation3], %s14
      %s16 = smul.addr %s12, 16
      %s17 = smul.addr %s16, 16
      %s18 = scalar_lea.hbm %s0, %s17
      %s20 = sshll.u32 [#allocation2], 4
      %s21 = int_to_ptr.vmem [resolvable:$true] %s20
      %23 = dma.hbm_to_vmem [thread:$0]  %s18, 256, %s21, [#allocation3]
    $region5: #{tpu_custom_call.1} parent=1 // pred_fallthru
      _
    // Predicated region
    $region6: #{tpu_custom_call.1} parent=1 // pred_check
      _
    $region7: #{tpu_custom_call.1} parent=1 // pred_check_branch
      %25 = sbr.rel (0) target = $region9
    $region8: #{tpu_custom_call.1} parent=1 // pred_region
      %s26 = sadd.s32 0, 0
      %s28 = ssub.s32 256, 256
      %29 = vsyncadd [#allocation6], %s28
      %s30 = smul.addr %s26, 16
      %s31 = smul.addr %s30, 16
      %s32 = scalar_lea.hbm %s1, %s31
      %s34 = sshll.u32 [#allocation5], 4
      %s35 = int_to_ptr.vmem [resolvable:$true] %s34
      %37 = dma.hbm_to_vmem [thread:$0]  %s32, 256, %s35, [#allocation6]
    $region9: #{tpu_custom_call.1} parent=1 // pred_fallthru
      _
    // Predicated region
    $region10: #{tpu_custom_call.1} parent=1 // pred_check
      _
    $region11: #{tpu_custom_call.1} parent=1 // pred_check_branch
      %39 = sbr.rel (0) target = $region13
    $region12: #{tpu_custom_call.1} parent=1 // pred_region
      %40 = dma.done [#allocation3], 256
    $region13: #{tpu_custom_call.1} parent=1 // pred_fallthru
      _
    // Predicated region
    $region14: #{tpu_custom_call.1} parent=1 // pred_check
      _
    $region15: #{tpu_custom_call.1} parent=1 // pred_check_branch
      %42 = sbr.rel (0) target = $region17
    $region16: #{tpu_custom_call.1} parent=1 // pred_region
      %43 = dma.done [#allocation6], 256
    $region17: #{tpu_custom_call.1} parent=1 // pred_fallthru
      _
    %s44 = sadd.s32 0, 0
    %s45 = sadd.s32 0, 0
    %p46 = scmp.eq.s32.totalorder 0, 0
    // Predicated region
    $region18: #{tpu_custom_call.1} parent=1 // pred_check
      %p47 = pneg %p46
    $region19: #{tpu_custom_call.1} parent=1 // pred_check_branch
      %49 = sbr.rel (%p47) target = $region21
    $region20: #{tpu_custom_call.1} parent=1 // pred_region
      %s50 = scalar_lea.smem [#allocation7], 0
      %51 = sst [smem:[%s50]] 0.0
    $region21: #{tpu_custom_call.1} parent=1 // pred_fallthru
      _
    %v52 = vld [vmem:[#allocation2] sm:$0xff]
    %v53 = vld [vmem:[#allocation2 + $0x8] sm:$0xff]
    %v54 = vld [vmem:[#allocation5] sm:$0xff]
    %v55 = vld [vmem:[#allocation5 + $0x8] sm:$0xff]
    %v56 = vsub.f32 %v52, %v54
    %v57 = vsub.f32 %v53, %v55
    %v58 = vand.u32 2147483647, %v52
    %v59 = vand.u32 2147483647, %v53
    %v60 = vpow.f32 %v54, 0.01
    %v61 = vpow.f32 %v55, 0.01
    %v62 = vsub.f32 1.0, %v52
    %v63 = vsub.f32 1.0, %v53
    %v64 = vand.u32 2147483647, %v62
    %v65 = vand.u32 2147483647, %v63
    %v66 = vsub.f32 %v64, %v58
    %v67 = vsub.f32 %v65, %v59
    %v68 = vmul.f32 %v60, %v66
    %v69 = vmul.f32 %v61, %v67
    %v70 = vadd.f32 %v58, %v68
    %v71 = vadd.f32 %v59, %v69
    %v72 = vmax.f32 %v52, 0.0
    %v73 = vmax.f32 %v53, 0.0
    %v74 = vmul.f32 %v52, %v54
    %v75 = vmul.f32 %v53, %v55
    %v76 = vsub.f32 %v72, %v74
    %v77 = vsub.f32 %v73, %v75
    %v78 = vsub.f32 0.0, %v58
    %v79 = vsub.f32 0.0, %v59
    %v80 = vmul.f32 %v78, 1.442695
    %v81 = vpow.pop %v80
    %v82 = vmul.f32 %v79, 1.442695
    %v83 = vpow.pop %v82
    %v84 = vadd.f32 %v81, 1.0
    %v85 = vlog2.pop %v84
    %v86 = vmul.f32 %v85, 0.6931472
    %v87 = vmul.f32 -0.5, %v81
    %v88 = vadd.f32 %v87, 1.0
    %v89 = vmul.f32 %v88, %v81
    %v90 = vand.u32 2147483647, %v81
    %vm91 = vcmp.lt.f32.partialorder %v90, 0.0004427343
    %v92 = vsel %vm91, %v89, %v86
    %v93 = vadd.f32 %v83, 1.0
    %v94 = vlog2.pop %v93
    %v95 = vmul.f32 %v94, 0.6931472
    %v96 = vmul.f32 -0.5, %v83
    %v97 = vadd.f32 %v96, 1.0
    %v98 = vmul.f32 %v97, %v83
    %v99 = vand.u32 2147483647, %v83
    %vm100 = vcmp.lt.f32.partialorder %v99, 0.0004427343
    %v101 = vsel %vm100, %v98, %v95
    %v102 = vadd.f32 %v76, %v92
    %v103 = vadd.f32 %v77, %v101
    %v104 = vmul.f32 %v56, %v56
    %v105 = vmul.f32 %v57, %v57
    %v106 = vmul.f32 %v102, %v70
    %v107 = vmul.f32 %v103, %v71
    %v108 = vmul.f32 %v106, %v104
    %v109 = vmul.f32 %v107, %v105
    %s110 = sld [smem:[#allocation7]]
    %v113 = vlaneseq
    %v114 = vshrl.u32 %v113, 7
    %v115 = vsub.s32 0, %v114
    %v116 = vrot.slane %v108, %v115
    %v117 = vlaneseq
    %v118 = vshrl.u32 %v117, 7
    %v119 = vsub.s32 1, %v118
    %v120 = vrot.slane %v108, %v119
    %v121 = vlaneseq
    %v122 = vshrl.u32 %v121, 7
    %v123 = vsub.s32 2, %v122
    %v124 = vrot.slane %v108, %v123
    %v125 = vlaneseq
    %v126 = vshrl.u32 %v125, 7
    %v127 = vsub.s32 3, %v126
    %v128 = vrot.slane %v108, %v127
    %v129 = vlaneseq
    %v130 = vshrl.u32 %v129, 7
    %v131 = vsub.s32 4, %v130
    %v132 = vrot.slane %v108, %v131
    %v133 = vlaneseq
    %v134 = vshrl.u32 %v133, 7
    %v135 = vsub.s32 5, %v134
    %v136 = vrot.slane %v108, %v135
    %v137 = vlaneseq
    %v138 = vshrl.u32 %v137, 7
    %v139 = vsub.s32 6, %v138
    %v140 = vrot.slane %v108, %v139
    %v141 = vlaneseq
    %v142 = vshrl.u32 %v141, 7
    %v143 = vsub.s32 7, %v142
    %v144 = vrot.slane %v108, %v143
    %v145 = vlaneseq
    %v146 = vshrl.u32 %v145, 7
    %v147 = vsub.s32 0, %v146
    %v148 = vrot.slane %v109, %v147
    %v149 = vlaneseq
    %v150 = vshrl.u32 %v149, 7
    %v151 = vsub.s32 1, %v150
    %v152 = vrot.slane %v109, %v151
    %v153 = vlaneseq
    %v154 = vshrl.u32 %v153, 7
    %v155 = vsub.s32 2, %v154
    %v156 = vrot.slane %v109, %v155
    %v157 = vlaneseq
    %v158 = vshrl.u32 %v157, 7
    %v159 = vsub.s32 3, %v158
    %v160 = vrot.slane %v109, %v159
    %v161 = vlaneseq
    %v162 = vshrl.u32 %v161, 7
    %v163 = vsub.s32 4, %v162
    %v164 = vrot.slane %v109, %v163
    %v165 = vlaneseq
    %v166 = vshrl.u32 %v165, 7
    %v167 = vsub.s32 5, %v166
    %v168 = vrot.slane %v109, %v167
    %v169 = vlaneseq
    %v170 = vshrl.u32 %v169, 7
    %v171 = vsub.s32 6, %v170
    %v172 = vrot.slane %v109, %v171
    %v173 = vlaneseq
    %v174 = vshrl.u32 %v173, 7
    %v175 = vsub.s32 7, %v174
    %v176 = vrot.slane %v109, %v175
    %vm193 = vcmask 1040384
    %v194 = vsel %vm193, %v116, 0.0
    %v195 = vsel %vm193, %v120, 0.0
    %v196 = vadd.f32 %v194, %v195
    %v197 = vsel %vm193, %v124, 0.0
    %v198 = vadd.f32 %v196, %v197
    %v199 = vsel %vm193, %v128, 0.0
    %v200 = vadd.f32 %v198, %v199
    %v201 = vsel %vm193, %v132, 0.0
    %v202 = vadd.f32 %v200, %v201
    %v203 = vsel %vm193, %v136, 0.0
    %v204 = vadd.f32 %v202, %v203
    %v205 = vsel %vm193, %v140, 0.0
    %v206 = vadd.f32 %v204, %v205
    %v207 = vsel %vm193, %v144, 0.0
    %v208 = vadd.f32 %v206, %v207
    %v209 = vsel %vm193, %v148, 0.0
    %v210 = vadd.f32 %v208, %v209
    %v211 = vsel %vm193, %v152, 0.0
    %v212 = vadd.f32 %v210, %v211
    %v213 = vsel %vm193, %v156, 0.0
    %v214 = vadd.f32 %v212, %v213
    %v215 = vsel %vm193, %v160, 0.0
    %v216 = vadd.f32 %v214, %v215
    %v217 = vsel %vm193, %v164, 0.0
    %v218 = vadd.f32 %v216, %v217
    %v219 = vsel %vm193, %v168, 0.0
    %v220 = vadd.f32 %v218, %v219
    %v221 = vsel %vm193, %v172, 0.0
    %v222 = vadd.f32 %v220, %v221
    %v223 = vsel %vm193, %v176, 0.0
    %v224 = vadd.f32 %v222, %v223
    %225 = vadd.xlane.f32.xlu0 %v224
    %v226 = vpop.xlane.xlu0 %225
    %v227 = vrot.slane %v226, 4
    %v228 = vadd.f32 %v226, %v227
    %v229 = vrot.slane %v228, 2
    %v230 = vadd.f32 %v228, %v229
    %v231 = vrot.slane %v230, 1
    %v232 = vadd.f32 %v230, %v231
    %s233 = vtos %v232
    %s234 = sadd.f32 %s110, %s233
    %s235 = scalar_lea.smem [#allocation7], 0
    %236 = sst [smem:[%s235]] %s234
    // Predicated region
    $region22: #{tpu_custom_call.1} parent=1 // pred_check
      _
    $region23: #{tpu_custom_call.1} parent=1 // pred_check_branch
      %238 = sbr.rel (0) target = $region25
    $region24: #{tpu_custom_call.1} parent=1 // pred_region
      %s240 = ssub.s32 16, 16
      %241 = vsyncadd [#allocation4], %s240
      %244 = dma.smem_to_hbm [#allocation7], 16, %s2, [#allocation4]
    $region25: #{tpu_custom_call.1} parent=1 // pred_fallthru
      _
    // Predicated region
    $region26: #{tpu_custom_call.1} parent=1 // pred_check
      _
    $region27: #{tpu_custom_call.1} parent=1 // pred_check_branch
      %246 = sbr.rel (0) target = $region29
    $region28: #{tpu_custom_call.1} parent=1 // pred_region
      %247 = dma.done [#allocation4], 16
    $region29: #{tpu_custom_call.1} parent=1 // pred_fallthru
      _
    %248 = sfence
    %249 = vsyncpa [#allocation3], 1
    %250 = vsyncpa [#allocation6], 1
    %251 = vsyncpa [#allocation4], 1

</llo_original>
